<compile_context>
chip_gen: v6e
topology: v6e:2x2x1
jax: 0.10.0
libtpu: 0.0.40
codegen_flags: <defaults>
</compile_context>

<pallas_src>
import numpy as np
import jax
import jax.numpy as jnp
from jax.experimental import pallas as pl
from jax.experimental.pallas import tpu as pltpu


# Row / lane layout of the packed (8, D) parameter block.
_ROW_B1, _ROW_GAMMA, _ROW_BETA, _ROW_WO, _ROW_SCALARS = 0, 1, 2, 3, 4
_LANE_B2, _LANE_BO = 0, 1
_LN_EPS = 1e-5


def _mlp2_kernel(x_ref, w1_ref, pk_ref, w2_ref, y_ref):
    """One grid step processes Bt independent (S, D) samples.

    x_ref  : (Bt, S, D)  stacked input arrays
    w1_ref : (D, D)      fc1 weight pre-transposed (h = x @ w1 + b1)
    pk_ref : (8, D)      packed params: b1 / gamma / beta / Wo row / scalars
    w2_ref : (S, 1)      fc2 weight as a sublane column
    y_ref  : (Bt, 1, 1)  per-sample scalar outputs
    """
    bt, s, d = x_ref.shape

    b1 = pk_ref[_ROW_B1:_ROW_B1 + 1, :]                                # (1, D)
    gamma = pk_ref[_ROW_GAMMA:_ROW_GAMMA + 1, :]                       # (1, D)
    beta = pk_ref[_ROW_BETA:_ROW_BETA + 1, :]                          # (1, D)
    wo = pk_ref[_ROW_WO:_ROW_WO + 1, :]                                # (1, D)
    b2 = pk_ref[_ROW_SCALARS:_ROW_SCALARS + 1, _LANE_B2:_LANE_B2 + 1]  # (1, 1)
    bo = pk_ref[_ROW_SCALARS:_ROW_SCALARS + 1, _LANE_BO:_LANE_BO + 1]  # (1, 1)

    # ---- fc1 + sigmoid: one dense (Bt*S, D) @ (D, D) MXU matmul -------------
    x = x_ref[...].reshape(bt * s, d)       # layout-preserving merge (S % 8 == 0)
    h1 = jax.nn.sigmoid(
        jnp.dot(x, w1_ref[...], preferred_element_type=jnp.float32) + b1
    )                                                                   # (Bt*S, D)

    # ---- LayerNorm: E[x^2] - mu^2 form (both lane reduces issue together) ---
    mu = jnp.mean(h1, axis=-1, keepdims=True)
    ms = jnp.mean(h1 * h1, axis=-1, keepdims=True)
    var = ms - mu * mu
    h1n = (h1 - mu) * jax.lax.rsqrt(var + _LN_EPS) * gamma + beta       # (Bt*S, D)
    h1n = h1n.reshape(bt, s, d)

    # ---- fc2 over the stacked dim, off the MXU (VPU mul + sublane reduce) ---
    # hidden2^T[b] = sigmoid(sum_s w2[s] * h1n[b, s, :] + b2)  -> (Bt, 1, D)
    h2 = jax.nn.sigmoid(
        jnp.sum(h1n * w2_ref[...], axis=1, keepdims=True) + b2
    )                                                                   # (Bt, 1, D)

    # ---- output head, off the MXU (VPU mul + lane reduce) -------------------
    y_ref[...] = jnp.sum(h2 * wo, axis=-1, keepdims=True) + bo          # (Bt, 1, 1)


def init_params(key, input_dim, stacked_dim):
    """Deterministic synthetic params (nn.Linear / nn.LayerNorm shapes) plus the
    kernel-layout copies (pre-transposed / packed), built once up front."""
    ks = jax.random.split(key, 8)

    def u(k, shape, fan_in):
        bound = 1.0 / np.sqrt(fan_in)
        return jax.random.uniform(k, shape, jnp.float32, -bound, bound)

    W1 = u(ks[0], (input_dim, input_dim), input_dim)   # fc1.weight (out, in)
    b1 = u(ks[1], (input_dim,), input_dim)             # fc1.bias
    W2 = u(ks[2], (1, stacked_dim), stacked_dim)       # fc2.weight
    b2 = u(ks[3], (1,), stacked_dim)                   # fc2.bias
    Wo = u(ks[4], (1, input_dim), input_dim)           # output.weight
    bo = u(ks[5], (1,), input_dim)                     # output.bias
    gamma = 1.0 + 0.1 * jax.random.uniform(ks[6], (input_dim,), jnp.float32, -1.0, 1.0)
    beta = 0.1 * jax.random.uniform(ks[7], (input_dim,), jnp.float32, -1.0, 1.0)

    packed = jnp.zeros((8, input_dim), jnp.float32)
    packed = packed.at[_ROW_B1].set(b1)
    packed = packed.at[_ROW_GAMMA].set(gamma)
    packed = packed.at[_ROW_BETA].set(beta)
    packed = packed.at[_ROW_WO].set(Wo[0])
    packed = packed.at[_ROW_SCALARS, _LANE_B2].set(b2[0])
    packed = packed.at[_ROW_SCALARS, _LANE_BO].set(bo[0])

    return dict(
        # kernel-layout operands (3 tensors besides x)
        w1_t=jnp.asarray(W1.T),
        packed=packed,
        w2_col=jnp.asarray(W2.reshape(stacked_dim, 1)),
        # torch-layout copies used only by the pure-JAX reference
        W1=W1, b1=b1, W2=W2, b2=b2, Wo=Wo, bo=bo, gamma=gamma, beta=beta,
    )


def mlp2hidden_sigmoid_batched(x, params, *, samples_per_block=8):
    """x: (B, stacked_dim, input_dim) float32 -> (B, 1, 1) float32."""
    B, S, D = x.shape
    bt = max(1, min(samples_per_block, B))
    Bp = ((B + bt - 1) // bt) * bt
    if Bp != B:
        x = jnp.concatenate([x, jnp.zeros((Bp - B, S, D), x.dtype)], axis=0)

    out = pl.pallas_call(
        _mlp2_kernel,
        out_shape=jax.ShapeDtypeStruct((Bp, 1, 1), jnp.float32),
        grid=(Bp // bt,),
        in_specs=[
            pl.BlockSpec((bt, S, D), lambda g: (g, 0, 0)),  # per-step input block
            pl.BlockSpec((D, D), lambda g: (0, 0)),         # weights stay VMEM-resident
            pl.BlockSpec((8, D), lambda g: (0, 0)),
            pl.BlockSpec((S, 1), lambda g: (0, 0)),
        ],
        out_specs=pl.BlockSpec((bt, 1, 1), lambda g: (g, 0, 0)),
        compiler_params=pltpu.CompilerParams(
            dimension_semantics=("parallel",)),              # v7x: shard batch across TCs
    )(x, params["w1_t"], params["packed"], params["w2_col"])
    return out[:B]


def mlp2hidden_sigmoid(arrays, params):
    """Single sample, matching the torch module: (stacked_dim, input_dim) -> (1, 1)."""
    return mlp2hidden_sigmoid_batched(arrays[None], params, samples_per_block=1)[0]


def _ref_forward(arrays, params):
    """Pure-JAX reference mirroring the PyTorch forward (with its transposes)."""
    h1 = jax.nn.sigmoid(arrays @ params["W1"].T + params["b1"])
    mu = jnp.mean(h1, axis=-1, keepdims=True)
    var = jnp.mean((h1 - mu) ** 2, axis=-1, keepdims=True)
    h1 = (h1 - mu) * jax.lax.rsqrt(var + _LN_EPS) * params["gamma"] + params["beta"]
    hidden2 = jax.nn.sigmoid(h1.T @ params["W2"].T + params["b2"])   # (D, 1)
    return hidden2.T @ params["Wo"].T + params["bo"]                 # (1, 1)


if __name__ == "__main__":
    input_dim = 128     # feature dim (lane-aligned)
    stacked_dim = 16    # number of stacked arrays (rows of the input)
    batch = 16          # independent samples for the batched path

    key = jax.random.PRNGKey(0)
    kx, kb, kp = jax.random.split(key, 3)
    params = init_params(kp, input_dim, stacked_dim)

    # --- single-sample path: exactly the torch module's forward ---------------
    arrays = jax.random.normal(kx, (stacked_dim, input_dim), jnp.float32)
    out = jax.block_until_ready(mlp2hidden_sigmoid(arrays, params))
    assert out.shape == (1, 1), out.shape
    assert bool(jnp.all(jnp.isfinite(out)))
    ref = jax.block_until_ready(_ref_forward(arrays, params))
    np.testing.assert_allclose(np.asarray(out), np.asarray(ref), rtol=2e-4, atol=2e-5)

    # --- batched path: grid over batch, 8 samples/step -> 128-row fc1 MXU tiles
    xb = jax.random.normal(kb, (batch, stacked_dim, input_dim), jnp.float32)
    outb = jax.block_until_ready(
        mlp2hidden_sigmoid_batched(xb, params, samples_per_block=8))
    refb = jax.block_until_ready(jax.vmap(lambda a: _ref_forward(a, params))(xb))
    np.testing.assert_allclose(np.asarray(outb), np.asarray(refb), rtol=2e-4, atol=2e-5)

    print("KERNEL_OK")
</pallas_src>

<mosaic_0001>
module attributes {stable_mosaic.version = 11 : i64} {
  func.func @_mlp2_kernel(%arg0: i32, %arg1: memref<1x16x128xf32, #tpu.memory_space<vmem>>, %arg2: memref<128x128xf32, #tpu.memory_space<vmem>>, %arg3: memref<8x128xf32, #tpu.memory_space<vmem>>, %arg4: memref<16x1xf32, #tpu.memory_space<vmem>>, %arg5: memref<1x1x1xf32, #tpu.memory_space<vmem>>) attributes {dimension_semantics = [#tpu.dimension_semantics<parallel>], iteration_bounds = array<i64: 1>, scalar_prefetch = 0 : i64, scratch_operands = 0 : i64, tpu.core_type = #tpu.core_type<tc>, window_params = [{transform_indices = @transform_0, window_bounds = array<i64: 1, 16, 128>}, {pipeline_mode = #tpu.pipeline_mode<synchronous>, transform_indices = @transform_1, window_bounds = array<i64: 128, 128>}, {pipeline_mode = #tpu.pipeline_mode<synchronous>, transform_indices = @transform_2, window_bounds = array<i64: 8, 128>}, {pipeline_mode = #tpu.pipeline_mode<synchronous>, transform_indices = @transform_3, window_bounds = array<i64: 16, 1>}, {transform_indices = @transform_4, window_bounds = array<i64: 1, 1, 1>}]} {
    %c0 = arith.constant 0 : index
    %c0_0 = arith.constant 0 : index
    %0 = vector.load %arg3[%c0, %c0_0] : memref<8x128xf32, #tpu.memory_space<vmem>>, vector<1x128xf32>
    %c1 = arith.constant 1 : index
    %c0_1 = arith.constant 0 : index
    %1 = vector.load %arg3[%c1, %c0_1] : memref<8x128xf32, #tpu.memory_space<vmem>>, vector<1x128xf32>
    %c2 = arith.constant 2 : index
    %c0_2 = arith.constant 0 : index
    %2 = vector.load %arg3[%c2, %c0_2] : memref<8x128xf32, #tpu.memory_space<vmem>>, vector<1x128xf32>
    %c3 = arith.constant 3 : index
    %c0_3 = arith.constant 0 : index
    %3 = vector.load %arg3[%c3, %c0_3] : memref<8x128xf32, #tpu.memory_space<vmem>>, vector<1x128xf32>
    %c4 = arith.constant 4 : index
    %c0_4 = arith.constant 0 : index
    %4 = vector.load %arg3[%c4, %c0_4] : memref<8x128xf32, #tpu.memory_space<vmem>>, vector<1x1xf32>
    %c4_5 = arith.constant 4 : index
    %c1_6 = arith.constant 1 : index
    %5 = vector.load %arg3[%c4_5, %c1_6] : memref<8x128xf32, #tpu.memory_space<vmem>>, vector<1x1xf32>
    %c0_7 = arith.constant 0 : index
    %c0_8 = arith.constant 0 : index
    %c0_9 = arith.constant 0 : index
    %6 = vector.load %arg1[%c0_7, %c0_8, %c0_9] : memref<1x16x128xf32, #tpu.memory_space<vmem>>, vector<1x16x128xf32>
    %7 = vector.shape_cast %6 : vector<1x16x128xf32> to vector<16x128xf32>
    %c0_10 = arith.constant 0 : index
    %c0_11 = arith.constant 0 : index
    %8 = vector.load %arg2[%c0_10, %c0_11] : memref<128x128xf32, #tpu.memory_space<vmem>>, vector<128x128xf32>
    %cst = arith.constant dense<0.000000e+00> : vector<16x128xf32>
    %9 = tpu.matmul %7, %8, %cst {dimension_numbers = #tpu.dot_dimension_numbers<[1], [0], [0], [1], [0, 0, 1, 1], [], []>} : vector<16x128xf32>, vector<128x128xf32>, vector<16x128xf32> -> vector<16x128xf32>
    %10 = vector.broadcast %0 : vector<1x128xf32> to vector<16x128xf32>
    %11 = arith.addf %9, %10 : vector<16x128xf32>
    %12 = arith.negf %11 : vector<16x128xf32>
    %13 = math.exp %12 : vector<16x128xf32>
    %cst_12 = arith.constant 1.000000e+00 : f32
    %14 = vector.broadcast %cst_12 : f32 to vector<16x128xf32>
    %15 = arith.addf %14, %13 : vector<16x128xf32>
    %16 = arith.divf %14, %15 : vector<16x128xf32>
    %cst_13 = arith.constant dense<0.000000e+00> : vector<16xf32>
    %17 = vector.multi_reduction <add>, %16, %cst_13 [1] : vector<16x128xf32> to vector<16xf32>
    %18 = vector.shape_cast %17 : vector<16xf32> to vector<16x1xf32>
    %cst_14 = arith.constant 1.280000e+02 : f32
    %19 = vector.broadcast %cst_14 : f32 to vector<16x1xf32>
    %20 = arith.divf %18, %19 : vector<16x1xf32>
    %21 = arith.mulf %16, %16 : vector<16x128xf32>
    %cst_15 = arith.constant dense<0.000000e+00> : vector<16xf32>
    %22 = vector.multi_reduction <add>, %21, %cst_15 [1] : vector<16x128xf32> to vector<16xf32>
    %23 = vector.shape_cast %22 : vector<16xf32> to vector<16x1xf32>
    %cst_16 = arith.constant 1.280000e+02 : f32
    %24 = vector.broadcast %cst_16 : f32 to vector<16x1xf32>
    %25 = arith.divf %23, %24 : vector<16x1xf32>
    %26 = arith.mulf %20, %20 : vector<16x1xf32>
    %27 = arith.subf %25, %26 : vector<16x1xf32>
    %28 = vector.broadcast %20 : vector<16x1xf32> to vector<16x128xf32>
    %29 = arith.subf %16, %28 : vector<16x128xf32>
    %cst_17 = arith.constant 9.99999974E-6 : f32
    %30 = vector.broadcast %cst_17 : f32 to vector<16x1xf32>
    %31 = arith.addf %27, %30 : vector<16x1xf32>
    %32 = math.rsqrt %31 : vector<16x1xf32>
    %33 = vector.broadcast %32 : vector<16x1xf32> to vector<16x128xf32>
    %34 = arith.mulf %29, %33 : vector<16x128xf32>
    %35 = vector.broadcast %1 : vector<1x128xf32> to vector<16x128xf32>
    %36 = arith.mulf %34, %35 : vector<16x128xf32>
    %37 = vector.broadcast %2 : vector<1x128xf32> to vector<16x128xf32>
    %38 = arith.addf %36, %37 : vector<16x128xf32>
    %39 = vector.shape_cast %38 : vector<16x128xf32> to vector<1x16x128xf32>
    %c0_18 = arith.constant 0 : index
    %c0_19 = arith.constant 0 : index
    %40 = vector.load %arg4[%c0_18, %c0_19] : memref<16x1xf32, #tpu.memory_space<vmem>>, vector<16x1xf32>
    %41 = vector.shape_cast %40 : vector<16x1xf32> to vector<1x16x1xf32>
    %42 = vector.broadcast %41 : vector<1x16x1xf32> to vector<1x16x128xf32>
    %43 = arith.mulf %39, %42 : vector<1x16x128xf32>
    %cst_20 = arith.constant dense<0.000000e+00> : vector<1x128xf32>
    %44 = vector.multi_reduction <add>, %43, %cst_20 [1] : vector<1x16x128xf32> to vector<1x128xf32>
    %45 = vector.shape_cast %44 : vector<1x128xf32> to vector<1x1x128xf32>
    %46 = vector.shape_cast %4 : vector<1x1xf32> to vector<1x1x1xf32>
    %47 = vector.broadcast %46 : vector<1x1x1xf32> to vector<1x1x128xf32>
    %48 = arith.addf %45, %47 : vector<1x1x128xf32>
    %49 = arith.negf %48 : vector<1x1x128xf32>
    %50 = math.exp %49 : vector<1x1x128xf32>
    %cst_21 = arith.constant 1.000000e+00 : f32
    %51 = vector.broadcast %cst_21 : f32 to vector<1x1x128xf32>
    %52 = arith.addf %51, %50 : vector<1x1x128xf32>
    %53 = arith.divf %51, %52 : vector<1x1x128xf32>
    %54 = vector.shape_cast %3 : vector<1x128xf32> to vector<1x1x128xf32>
    %55 = arith.mulf %53, %54 : vector<1x1x128xf32>
    %cst_22 = arith.constant dense<0.000000e+00> : vector<1x1xf32>
    %56 = vector.multi_reduction <add>, %55, %cst_22 [2] : vector<1x1x128xf32> to vector<1x1xf32>
    %57 = vector.shape_cast %56 : vector<1x1xf32> to vector<1x1x1xf32>
    %58 = vector.shape_cast %5 : vector<1x1xf32> to vector<1x1x1xf32>
    %59 = arith.addf %57, %58 : vector<1x1x1xf32>
    %c0_23 = arith.constant 0 : index
    %c0_24 = arith.constant 0 : index
    %c0_25 = arith.constant 0 : index
    %60 = vector.load %arg5[%c0_23, %c0_24, %c0_25] : memref<1x1x1xf32, #tpu.memory_space<vmem>>, vector<1x1x1xf32>
    tpu.vector_store %arg5[%c0_23, %c0_24, %c0_25], %59 {strides = array<i32>} : memref<1x1x1xf32, #tpu.memory_space<vmem>>, vector<1x1x1xf32>,
    return
  }
  func.func @transform_0(%arg0: i32) -> (i32, i32, i32) {
    %c0_i32 = arith.constant 0 : i32
    %c0_i32_0 = arith.constant 0 : i32
    %c0_i32_1 = arith.constant 0 : i32
    return %arg0, %c0_i32, %c0_i32_0 : i32, i32, i32
  }
  func.func @transform_1(%arg0: i32) -> (i32, i32) {
    %c0_i32 = arith.constant 0 : i32
    %c0_i32_0 = arith.constant 0 : i32
    %c0_i32_1 = arith.constant 0 : i32
    return %c0_i32, %c0_i32_0 : i32, i32
  }
  func.func @transform_2(%arg0: i32) -> (i32, i32) {
    %c0_i32 = arith.constant 0 : i32
    %c0_i32_0 = arith.constant 0 : i32
    %c0_i32_1 = arith.constant 0 : i32
    return %c0_i32, %c0_i32_0 : i32, i32
  }
  func.func @transform_3(%arg0: i32) -> (i32, i32) {
    %c0_i32 = arith.constant 0 : i32
    %c0_i32_0 = arith.constant 0 : i32
    %c0_i32_1 = arith.constant 0 : i32
    return %c0_i32, %c0_i32_0 : i32, i32
  }
  func.func @transform_4(%arg0: i32) -> (i32, i32, i32) {
    %c0_i32 = arith.constant 0 : i32
    %c0_i32_0 = arith.constant 0 : i32
    %c0_i32_1 = arith.constant 0 : i32
    return %arg0, %c0_i32, %c0_i32_0 : i32, i32, i32
  }
}

</mosaic_0001>

<llo_original>
// kernel: tpu_custom_call.1
$region0: #{tpu_custom_call.1}
  #allocation0 [shape = 'u32[]', space=smem, size = 0x4, offset = 0x4, fixed_abs, tag = 'smem constant byte address 0x4 - core index']
  #allocation1 [shape = 'u32[144,128]{1,0:T(1,128)}', space=vmem, size = 0x12000, scoped, tag = 'internal scratch']
  %s0 = inlined_call_operand.vmem [shape: f32[1,16,128], index: 0, kind: input, shape index: {}]
  %s1 = inlined_call_operand.hbm [shape: f32[128,128], index: 1, kind: input, shape index: {}]
  %s2 = inlined_call_operand.hbm [shape: f32[8,128], index: 2, kind: input, shape index: {}]
  %s3 = inlined_call_operand.vmem [shape: f32[16,1], index: 3, kind: input, shape index: {}]
  %s4 = inlined_call_operand.hbm [shape: f32[1,1,1], index: 4, kind: output, shape index: {}]
  %s5 = sld [smem:[#allocation0]]
  $region34: #{tpu_custom_call.1} parent=0
    _
  %s7 = ssub.s32 1, %s5
  %s8 = scalar_select 0, %s7, %s5
  $region1: #{tpu_custom_call.1} parent=0
    #allocation2 [shape = 'u8[65536]{0}', space=vmem, size = 0x10000, scoped, tag = 'input window, operand 1, single buffered']
    #allocation3 [shape = 's32[1]{0}', space=sflag, size = 0x4, scoped, tag = 'scoped memory for tpu_custom_call.1']
    #allocation4 [shape = 's32[1]{0}', space=sflag, size = 0x4, scoped, tag = 'scoped memory for tpu_custom_call.1']
    #allocation5 [shape = 'u8[4096]{0}', space=vmem, size = 0x1000, scoped, tag = 'input window, operand 2, single buffered']
    #allocation6 [shape = 's32[1]{0}', space=sflag, size = 0x4, scoped, tag = 'scoped memory for tpu_custom_call.1']
    #allocation7 [shape = 'u8[512]{0}', space=vmem, size = 0x400, scoped, tag = 'output window, operand 0, single buffered']
    %9 = vsyncpa [#allocation3], 0
    %10 = vsyncpa [#allocation6], 0
    %11 = vsyncpa [#allocation4], 0
    // Predicated region
    $region2: #{tpu_custom_call.1} parent=1 // pred_check
      _
    $region3: #{tpu_custom_call.1} parent=1 // pred_check_branch
      %13 = sbr.rel (0) target = $region5
    $region4: #{tpu_custom_call.1} parent=1 // pred_region
      _
    $region5: #{tpu_custom_call.1} parent=1 // pred_fallthru
      _
    // Predicated region
    $region6: #{tpu_custom_call.1} parent=1 // pred_check
      _
    $region7: #{tpu_custom_call.1} parent=1 // pred_check_branch
      %15 = sbr.rel (0) target = $region9
    $region8: #{tpu_custom_call.1} parent=1 // pred_region
      %s17 = ssub.s32 2048, 2048
      %18 = vsyncadd [#allocation3], %s17
      %s19 = sshll.u32 [#allocation2], 4
      %s20 = int_to_ptr.vmem [resolvable:$true] %s19
      %25 = dma.hbm_to_vmem [thread:$0]  %s1, 2048, %s20, [#allocation3], 128, 128, 8
    $region9: #{tpu_custom_call.1} parent=1 // pred_fallthru
      _
    // Predicated region
    $region10: #{tpu_custom_call.1} parent=1 // pred_check
      _
    $region11: #{tpu_custom_call.1} parent=1 // pred_check_branch
      %27 = sbr.rel (0) target = $region13
    $region12: #{tpu_custom_call.1} parent=1 // pred_region
      %s29 = ssub.s32 128, 128
      %30 = vsyncadd [#allocation6], %s29
      %s32 = sshll.u32 [#allocation5], 4
      %s33 = int_to_ptr.vmem [resolvable:$true] %s32
      %35 = dma.hbm_to_vmem [thread:$0]  %s2, 128, %s33, [#allocation6]
    $region13: #{tpu_custom_call.1} parent=1 // pred_fallthru
      _
    // Predicated region
    $region14: #{tpu_custom_call.1} parent=1 // pred_check
      _
    $region15: #{tpu_custom_call.1} parent=1 // pred_check_branch
      %37 = sbr.rel (0) target = $region17
    $region16: #{tpu_custom_call.1} parent=1 // pred_region
      _
    $region17: #{tpu_custom_call.1} parent=1 // pred_fallthru
      _
    // Predicated region
    $region18: #{tpu_custom_call.1} parent=1 // pred_check
      _
    $region19: #{tpu_custom_call.1} parent=1 // pred_check_branch
      %39 = sbr.rel (0) target = $region21
    $region20: #{tpu_custom_call.1} parent=1 // pred_region
      %40 = dma.done [#allocation3], 2048
    $region21: #{tpu_custom_call.1} parent=1 // pred_fallthru
      _
    // Predicated region
    $region22: #{tpu_custom_call.1} parent=1 // pred_check
      _
    $region23: #{tpu_custom_call.1} parent=1 // pred_check_branch
      %42 = sbr.rel (0) target = $region25
    $region24: #{tpu_custom_call.1} parent=1 // pred_region
      %43 = dma.done [#allocation6], 128
    $region25: #{tpu_custom_call.1} parent=1 // pred_fallthru
      _
    %v44 = vld [vmem:[#allocation5] sm:$0x1]
    %v45 = vld [vmem:[#allocation5 + $0x1] sm:$0x1]
    %v46 = vld [vmem:[#allocation5 + $0x2] sm:$0x1]
    %v47 = vld [vmem:[#allocation5 + $0x3] sm:$0x1]
    %v48 = vld [vmem:[#allocation5 + $0x4] sm:$0x1]
    %v49 = vld [vmem:[%s0] sm:$0xff]
    %v50 = vld [vmem:[%s0 + $0x8] sm:$0xff]
    %v51 = vld [vmem:[#allocation2] sm:$0xff]
    %v52 = vld [vmem:[#allocation2 + $0x8] sm:$0xff]
    %v53 = vld [vmem:[#allocation2 + $0x10] sm:$0xff]
    %v54 = vld [vmem:[#allocation2 + $0x18] sm:$0xff]
    %v55 = vld [vmem:[#allocation2 + $0x20] sm:$0xff]
    %v56 = vld [vmem:[#allocation2 + $0x28] sm:$0xff]
    %v57 = vld [vmem:[#allocation2 + $0x30] sm:$0xff]
    %v58 = vld [vmem:[#allocation2 + $0x38] sm:$0xff]
    %v59 = vld [vmem:[#allocation2 + $0x40] sm:$0xff]
    %v60 = vld [vmem:[#allocation2 + $0x48] sm:$0xff]
    %v61 = vld [vmem:[#allocation2 + $0x50] sm:$0xff]
    %v62 = vld [vmem:[#allocation2 + $0x58] sm:$0xff]
    %v63 = vld [vmem:[#allocation2 + $0x60] sm:$0xff]
    %v64 = vld [vmem:[#allocation2 + $0x68] sm:$0xff]
    %v65 = vld [vmem:[#allocation2 + $0x70] sm:$0xff]
    %v66 = vld [vmem:[#allocation2 + $0x78] sm:$0xff]
    %v67 = vlaneseq
    %v68 = vshrl.u32 %v67, 7
    %v69 = vsub.s32 0, %v68
    %v70 = vrot.slane %v44, %v69
    %71 = vmatprep.subr.mxu0 0.0
    %72 = vmatpush1.msra.mxu0 %v66
    %73 = vmatprep.subr.mxu0 0.0
    %74 = vmatpush1.msra.mxu0 %v65
    %75 = vmatprep.subr.mxu0 0.0
    %76 = vmatpush1.msra.mxu0 %v64
    %77 = vmatprep.subr.mxu0 0.0
    %78 = vmatpush1.msra.mxu0 %v63
    %79 = vmatprep.subr.mxu0 0.0
    %80 = vmatpush1.msra.mxu0 %v62
    %81 = vmatprep.subr.mxu0 0.0
    %82 = vmatpush1.msra.mxu0 %v61
    %83 = vmatprep.subr.mxu0 0.0
    %84 = vmatpush1.msra.mxu0 %v60
    %85 = vmatprep.subr.mxu0 0.0
    %86 = vmatpush1.msra.mxu0 %v59
    %87 = vmatprep.subr.mxu0 0.0
    %88 = vmatpush1.msra.mxu0 %v58
    %89 = vmatprep.subr.mxu0 0.0
    %90 = vmatpush1.msra.mxu0 %v57
    %91 = vmatprep.subr.mxu0 0.0
    %92 = vmatpush1.msra.mxu0 %v56
    %93 = vmatprep.subr.mxu0 0.0
    %94 = vmatpush1.msra.mxu0 %v55
    %95 = vmatprep.subr.mxu0 0.0
    %96 = vmatpush1.msra.mxu0 %v54
    %97 = vmatprep.subr.mxu0 0.0
    %98 = vmatpush1.msra.mxu0 %v53
    %99 = vmatprep.subr.mxu0 0.0
    %100 = vmatpush1.msra.mxu0 %v52
    %101 = vmatprep.subr.mxu0 0.0
    %102 = vmatpush1.msra.mxu0 %v51
    %103 = vmatprep.subr.mxu0 0.0
    %104 = vmatpush2.msra.mxu0 0.0
    %105 = vmatprep.subr.mxu0 0.0
    %106 = vmatpush2.msra.mxu0 0.0
    %107 = vmatprep.subr.mxu0 0.0
    %108 = vmatpush2.msra.mxu0 0.0
    %109 = vmatprep.subr.mxu0 0.0
    %110 = vmatpush2.msra.mxu0 0.0
    %111 = vmatprep.subr.mxu0 0.0
    %112 = vmatpush2.msra.mxu0 0.0
    %113 = vmatprep.subr.mxu0 0.0
    %114 = vmatpush2.msra.mxu0 0.0
    %115 = vmatprep.subr.mxu0 0.0
    %116 = vmatpush2.msra.mxu0 0.0
    %117 = vmatprep.subr.mxu0 0.0
    %118 = vmatpush2.msra.mxu0 0.0
    %119 = vmatprep.subr.mxu0 0.0
    %120 = vmatpush2.msra.mxu0 0.0
    %121 = vmatprep.subr.mxu0 0.0
    %122 = vmatpush2.msra.mxu0 0.0
    %123 = vmatprep.subr.mxu0 0.0
    %124 = vmatpush2.msra.mxu0 0.0
    %125 = vmatprep.subr.mxu0 0.0
    %126 = vmatpush2.msra.mxu0 0.0
    %127 = vmatprep.subr.mxu0 0.0
    %128 = vmatpush2.msra.mxu0 0.0
    %129 = vmatprep.subr.mxu0 0.0
    %130 = vmatpush2.msra.mxu0 0.0
    %131 = vmatprep.subr.mxu0 0.0
    %132 = vmatpush2.msra.mxu0 0.0
    %133 = vmatprep.subr.mxu0 0.0
    %134 = vmatpush2.msra.mxu0 0.0
    %135 = vmatprep.mubr.f32.mxu0 0.0
    %136 = vmatmul.mubr.f32.gmra.mxu0 %v49
    %v137 = vpop.f32.mrf.mxu0
    %v138 = vadd.f32 %v70, %v137
    %v139 = vpop.f32.mrf.mxu0
    %140 = vmatprep.mubr.f32.mxu0 0.0
    %141 = vmatmul.mubr.f32.gmra.mxu0 %v50
    %v142 = vpop.f32.mrf.mxu0
    %v143 = vadd.f32 %v70, %v142
    %v144 = vpop.f32.mrf.mxu0
    %145 = vdwg.mxu0
    %v146 = vxor.u32 %v138, 2147483648
    %v147 = vxor.u32 %v143, 2147483648
    %v148 = vmul.f32 %v146, 1.442695
    %v149 = vpow.pop %v148
    %v150 = vmul.f32 %v147, 1.442695
    %v151 = vpow.pop %v150
    %v152 = vadd.f32 %v149, 1.0
    %v153 = vadd.f32 %v151, 1.0
    %v154 = vrcp.pop %v152
    %v155 = vmul.f32 1.0, %v154
    %v156 = vrcp.pop %v153
    %v157 = vmul.f32 1.0, %v156
    %158 = vadd.xlane.f32.xlu0 %v155
    %v159 = vpop.xlane.xlu0 %158
    %160 = vadd.xlane.f32.xlu0 %v157
    %v161 = vpop.xlane.xlu0 %160
    %v162 = vrcp.pop 128.0
    %v163 = vmul.f32 %v159, %v162
    %v164 = vmul.f32 %v161, %v162
    %v165 = vmul.f32 %v155, %v155
    %v166 = vmul.f32 %v157, %v157
    %167 = vadd.xlane.f32.xlu0 %v165
    %v168 = vpop.xlane.xlu0 %167
    %169 = vadd.xlane.f32.xlu0 %v166
    %v170 = vpop.xlane.xlu0 %169
    %v171 = vmul.f32 %v168, %v162
    %v172 = vmul.f32 %v170, %v162
    %v173 = vmul.f32 %v163, %v163
    %v174 = vmul.f32 %v164, %v164
    %v175 = vsub.f32 %v171, %v173
    %v176 = vsub.f32 %v172, %v174
    %v177 = vsub.f32 %v155, %v163
    %v178 = vsub.f32 %v157, %v164
    %v179 = vadd.f32 %v175, 1e-05
    %v180 = vadd.f32 %v176, 1e-05
    %v181 = vrsqrt.pop %v179
    %v182 = vrsqrt.pop %v180
    %v183 = vmul.f32 %v177, %v181
    %v184 = vmul.f32 %v178, %v182
    %v185 = vlaneseq
    %v186 = vshrl.u32 %v185, 7
    %v187 = vsub.s32 0, %v186
    %v188 = vrot.slane %v45, %v187
    %v189 = vmul.f32 %v183, %v188
    %v190 = vmul.f32 %v184, %v188
    %v191 = vlaneseq
    %v192 = vshrl.u32 %v191, 7
    %v193 = vsub.s32 0, %v192
    %v194 = vrot.slane %v46, %v193
    %v195 = vadd.f32 %v189, %v194
    %v196 = vadd.f32 %v190, %v194
    %v197 = vld [vmem:[%s3] sm:$0xff]
    %v198 = vld [vmem:[%s3 + $0x8] sm:$0xff]
    %200 = vset.pattern.permute.xlu0 0
    %201 = vperm.xlu0 %200, %v197
    %v202 = vpop.permute.xlu0 %201
    %205 = vset.pattern.permute.xlu0 0
    %206 = vperm.xlu0 %205, %v198
    %v207 = vpop.permute.xlu0 %206
    %v209 = vmul.f32 %v195, %v202
    %v210 = vmul.f32 %v196, %v207
    %v211 = vadd.f32 %v209, %v210
    %v212 = vrot.slane %v211, 4
    %v213 = vadd.f32 %v211, %v212
    %v214 = vrot.slane %v213, 2
    %v215 = vadd.f32 %v213, %v214
    %v216 = vrot.slane %v215, 1
    %v217 = vadd.f32 %v215, %v216
    %219 = vset.pattern.permute.xlu0 0
    %220 = vperm.xlu0 %219, %v48
    %v221 = vpop.permute.xlu0 %220
    %v223 = vadd.f32 %v217, %v221
    %v224 = vxor.u32 %v223, 2147483648
    %v225 = vmul.f32 %v224, 1.442695
    %v226 = vpow.pop %v225
    %v227 = vadd.f32 %v226, 1.0
    %v228 = vrcp.pop %v227
    %v229 = vmul.f32 1.0, %v228
    %v230 = vmul.f32 %v229, %v47
    %vm231 = vcmask 1040384
    %v232 = vsel %vm231, %v230, 0.0
    %233 = vadd.xlane.f32.xlu0 %v232
    %v234 = vpop.xlane.xlu0 %233
    %v235 = vadd.f32 %v234, %v48
    %237 = vrot.lane.b32.xlu0 %v235, 127
    %v238 = vpop.permute.xlu0 %237
    %vm240 = vcmask 0
    %241 = vst.msk [vmem:[#allocation7] sm:$0x1] %vm240, %v238
    // Predicated region
    $region26: #{tpu_custom_call.1} parent=1 // pred_check
      _
    $region27: #{tpu_custom_call.1} parent=1 // pred_check_branch
      %243 = sbr.rel (0) target = $region29
    $region28: #{tpu_custom_call.1} parent=1 // pred_region
      %s245 = ssub.s32 16, 16
      %246 = vsyncadd [#allocation4], %s245
      %s248 = sshll.u32 [#allocation7], 4
      %s249 = int_to_ptr.vmem [resolvable:$true] %s248
      %251 = dma.vmem_to_hbm [thread:$0]  %s249, 16, %s4, [#allocation4]
    $region29: #{tpu_custom_call.1} parent=1 // pred_fallthru
      _
    // Predicated region
    $region30: #{tpu_custom_call.1} parent=1 // pred_check
      _
    $region31: #{tpu_custom_call.1} parent=1 // pred_check_branch
      %253 = sbr.rel (0) target = $region33
    $region32: #{tpu_custom_call.1} parent=1 // pred_region
      %254 = dma.done [#allocation4], 16
    $region33: #{tpu_custom_call.1} parent=1 // pred_fallthru
      _
    %255 = vsyncpa [#allocation3], 1
    %256 = vsyncpa [#allocation6], 1
    %257 = vsyncpa [#allocation4], 1

</llo_original>
